<compile_context>
chip_gen: v5e
topology: v5e:2x2
jax: 0.10.0
libtpu: 0.0.40
codegen_flags: <defaults>
</compile_context>

<pallas_src>
import jax
import jax.numpy as jnp
from jax import lax
from jax.experimental import pallas as pl
from jax.experimental.pallas import tpu as pltpu


# ---------------------------------------------------------------------------
# Kernel
# ---------------------------------------------------------------------------
def _residual_block_kernel(x_ref,             # (1, H, W*C)  bf16 input slab
                           w1_ref,            # (3*W*C, W*C) bf16 banded conv1 weight
                           s1_ref, t1_ref,    # (1, W*C)     f32 folded BN1 scale/shift
                           w2_ref,            # (3*W*C, W*C) bf16 banded conv2 weight
                           s2_ref, t2_ref,    # (1, W*C)     f32 folded BN2*BN3 scale/shift
                           o_ref):            # (1, H, W*C)  f32 output slab
    H = o_ref.shape[1]
    WC = o_ref.shape[2]

    x = x_ref[0]                               # (H, WC) bf16

    def conv3x3(h, w_ref):
        # h: (H, WC) in bf16.  The dx/channel mixing lives inside the banded
        # weight; only the dy halo needs explicit zero-row shifts.
        z = jnp.zeros((1, WC), h.dtype)
        h_up = jnp.concatenate([z, h[:H - 1, :]], axis=0)   # row r -> h[r-1]
        h_dn = jnp.concatenate([h[1:, :], z], axis=0)       # row r -> h[r+1]
        h3 = jnp.concatenate([h_up, h, h_dn], axis=1)       # (H, 3*WC)
        return jnp.dot(h3, w_ref[...],                      # single MXU call
                       preferred_element_type=jnp.float32)  # (H, WC) f32

    # ---- conv1 + BN1 + ReLU -------------------------------------------------
    a1 = conv3x3(x, w1_ref)
    h1 = jnp.maximum(a1 * s1_ref[...] + t1_ref[...], 0.0)

    # ---- conv2 + BN2 (outer BN folded in), residual add, ReLU ---------------
    a2 = conv3x3(h1.astype(x.dtype), w2_ref)
    y = a2 * s2_ref[...] + t2_ref[...] + x.astype(jnp.float32)
    o_ref[0] = jnp.maximum(y, 0.0).astype(o_ref.dtype)


# ---------------------------------------------------------------------------
# Wrapper
# ---------------------------------------------------------------------------
def _build_band_weight(w, W):
    """w: (3, 3, C, C) HWIO  ->  (3*W*C, W*C) banded weight.

    big[dy*W*C + wi*C + ci, wo*C + co] = w[dy, wi-wo+1, ci, co] when
    0 <= wi-wo+1 < 3, else 0.  With this, a SAME 3x3 conv on an (H, W*C) slab
    is:  out[h] = sum_dy xrow[h+dy-1] @ big[dy]  (zero rows past the H edge).
    """
    C = w.shape[2]
    wi = jnp.arange(W)[:, None]
    wo = jnp.arange(W)[None, :]
    dx = wi - wo + 1                                   # (W, W)
    valid = (dx >= 0) & (dx < 3)
    g = w[:, jnp.clip(dx, 0, 2)]                       # (3, wi, wo, ci, co)
    g = jnp.where(valid[None, :, :, None, None], g, 0.0)
    g = jnp.transpose(g, (0, 1, 3, 2, 4))              # (3, wi, ci, wo, co)
    return g.reshape(3 * W * C, W * C)


def residual_block_pallas(x_nhwc, w1, s1, t1, w2, s2, t2, s3, t3):
    """x_nhwc: (N, H, W, C) f32.  w*: (3,3,C,C) HWIO.  s*/t*: (C,) folded BN."""
    N, H, W, C = x_nhwc.shape
    WC = W * C

    # Fold the outer BN into conv2's affine:  (a*s2+t2)*s3+t3 = a*(s2*s3) + (t2*s3+t3)
    s2f = s2 * s3
    t2f = t2 * s3 + t3

    bw1 = _build_band_weight(w1, W).astype(jnp.bfloat16)
    bw2 = _build_band_weight(w2, W).astype(jnp.bfloat16)
    x2d = x_nhwc.reshape(N, H, WC).astype(jnp.bfloat16)

    # Per-channel vectors tiled over W so they broadcast over the (w,c) lanes.
    def tile_vec(v):
        return jnp.tile(v.astype(jnp.float32), W).reshape(1, WC)

    full2 = lambda n: (0, 0)
    grid_spec = pltpu.PrefetchScalarGridSpec(
        num_scalar_prefetch=0,
        grid=(N,),
        in_specs=[
            pl.BlockSpec((1, H, WC), lambda n: (n, 0, 0)),
            pl.BlockSpec((3 * WC, WC), full2),
            pl.BlockSpec((1, WC), full2),
            pl.BlockSpec((1, WC), full2),
            pl.BlockSpec((3 * WC, WC), full2),
            pl.BlockSpec((1, WC), full2),
            pl.BlockSpec((1, WC), full2),
        ],
        out_specs=pl.BlockSpec((1, H, WC), lambda n: (n, 0, 0)),
    )

    out2d = pl.pallas_call(
        _residual_block_kernel,
        out_shape=jax.ShapeDtypeStruct((N, H, WC), jnp.float32),
        grid_spec=grid_spec,
        compiler_params=pltpu.CompilerParams(
            dimension_semantics=("parallel",)),
    )(x2d, bw1, tile_vec(s1), tile_vec(t1), bw2, tile_vec(s2f), tile_vec(t2f))

    return out2d.reshape(N, H, W, C)


# ---------------------------------------------------------------------------
# Pure-JAX reference (same semantics, same bf16 rounding points).
# ---------------------------------------------------------------------------
def residual_block_ref(x, w1, s1, t1, w2, s2, t2, s3, t3):
    f32 = jnp.float32
    xb = x.astype(jnp.bfloat16).astype(f32)
    w1b = w1.astype(jnp.bfloat16).astype(f32)
    w2b = w2.astype(jnp.bfloat16).astype(f32)

    def conv(h, w):
        return lax.conv_general_dilated(
            h, w, window_strides=(1, 1), padding="SAME",
            dimension_numbers=("NHWC", "HWIO", "NHWC"),
            precision=lax.Precision.HIGHEST)

    h = jnp.maximum(conv(xb, w1b) * s1 + t1, 0.0)
    h = h.astype(jnp.bfloat16).astype(f32)          # kernel rounds h1 to bf16
    h = conv(h, w2b) * s2 + t2
    h = h * s3 + t3
    return jnp.maximum(h + xb, 0.0)


def fold_bn(gamma, beta, mean, var, conv_bias=None, eps=1e-5):
    scale = gamma / jnp.sqrt(var + eps)
    shift = beta - mean * scale
    if conv_bias is not None:
        shift = shift + conv_bias * scale
    return scale, shift


if __name__ == "__main__":
    # ResidualBlock requires in_channels == num_filters for the residual add.
    # NHWC (2, 16, 16, 8) == NCHW (2, 8, 16, 16); W*C = 128 (lane-dense).
    N, H, W, C = 2, 16, 16, 8

    key = jax.random.PRNGKey(0)
    ks = jax.random.split(key, 16)

    x = jax.random.normal(ks[0], (N, H, W, C), jnp.float32)

    # Conv weights in HWIO + biases.
    w1 = jax.random.normal(ks[1], (3, 3, C, C), jnp.float32) * 0.1
    b1 = jax.random.normal(ks[2], (C,), jnp.float32) * 0.1
    w2 = jax.random.normal(ks[3], (3, 3, C, C), jnp.float32) * 0.1
    b2 = jax.random.normal(ks[4], (C,), jnp.float32) * 0.1

    # BatchNorm parameters (inference-mode running stats), deterministic.
    def bn_params(k):
        kg, kb, km, kv = jax.random.split(k, 4)
        gamma = 1.0 + 0.1 * jax.random.normal(kg, (C,), jnp.float32)
        beta = 0.1 * jax.random.normal(kb, (C,), jnp.float32)
        mean = 0.1 * jax.random.normal(km, (C,), jnp.float32)
        var = 1.0 + 0.1 * jax.random.uniform(kv, (C,), jnp.float32)
        return gamma, beta, mean, var

    g1, be1, m1, v1 = bn_params(ks[5])   # BN inside conv_block
    g2, be2, m2, v2 = bn_params(ks[6])   # BN inside conv_block_na
    g3, be3, m3, v3 = bn_params(ks[7])   # outer self.bn

    s1, t1 = fold_bn(g1, be1, m1, v1, conv_bias=b1)
    s2, t2 = fold_bn(g2, be2, m2, v2, conv_bias=b2)
    s3, t3 = fold_bn(g3, be3, m3, v3)

    run = jax.jit(residual_block_pallas)
    out = run(x, w1, s1, t1, w2, s2, t2, s3, t3)
    out = jax.block_until_ready(out)

    ref = residual_block_ref(x, w1, s1, t1, w2, s2, t2, s3, t3)
    assert out.shape == (N, H, W, C)
    assert jnp.allclose(out, ref, atol=2e-3, rtol=2e-3), "mismatch vs reference"

    print("KERNEL_OK")
</pallas_src>

<mosaic_0001>
module attributes {stable_mosaic.version = 11 : i64} {
  func.func @_residual_block_kernel(%arg0: i32, %arg1: memref<1x16x128xbf16, #tpu.memory_space<vmem>>, %arg2: memref<384x128xbf16, #tpu.memory_space<vmem>>, %arg3: memref<1x128xf32, #tpu.memory_space<vmem>>, %arg4: memref<1x128xf32, #tpu.memory_space<vmem>>, %arg5: memref<384x128xbf16, #tpu.memory_space<vmem>>, %arg6: memref<1x128xf32, #tpu.memory_space<vmem>>, %arg7: memref<1x128xf32, #tpu.memory_space<vmem>>, %arg8: memref<1x16x128xf32, #tpu.memory_space<vmem>>) attributes {dimension_semantics = [#tpu.dimension_semantics<parallel>], iteration_bounds = array<i64: 2>, scalar_prefetch = 0 : i64, scratch_operands = 0 : i64, tpu.core_type = #tpu.core_type<tc>, window_params = [{transform_indices = @transform_0, window_bounds = array<i64: 1, 16, 128>}, {pipeline_mode = #tpu.pipeline_mode<synchronous>, transform_indices = @transform_1, window_bounds = array<i64: 384, 128>}, {pipeline_mode = #tpu.pipeline_mode<synchronous>, transform_indices = @transform_2, window_bounds = array<i64: 1, 128>}, {pipeline_mode = #tpu.pipeline_mode<synchronous>, transform_indices = @transform_3, window_bounds = array<i64: 1, 128>}, {pipeline_mode = #tpu.pipeline_mode<synchronous>, transform_indices = @transform_4, window_bounds = array<i64: 384, 128>}, {pipeline_mode = #tpu.pipeline_mode<synchronous>, transform_indices = @transform_5, window_bounds = array<i64: 1, 128>}, {pipeline_mode = #tpu.pipeline_mode<synchronous>, transform_indices = @transform_6, window_bounds = array<i64: 1, 128>}, {transform_indices = @transform_7, window_bounds = array<i64: 1, 16, 128>}]} {
    %c0 = arith.constant 0 : index
    %c0_0 = arith.constant 0 : index
    %c0_1 = arith.constant 0 : index
    %0 = vector.load %arg1[%c0, %c0_0, %c0_1] : memref<1x16x128xbf16, #tpu.memory_space<vmem>>, vector<1x16x128xbf16>
    %1 = vector.shape_cast %0 : vector<1x16x128xbf16> to vector<16x128xbf16>
    %cst = arith.constant 0.000000e+00 : bf16
    %2 = vector.broadcast %cst : bf16 to vector<1x128xbf16>
    %3 = vector.extract_strided_slice %1 {offsets = [0, 0], sizes = [15, 128], strides = [1, 1]} : vector<16x128xbf16> to vector<15x128xbf16>
    %4 = tpu.concatenate %2, %3 in 0 : vector<1x128xbf16>, vector<15x128xbf16> -> vector<16x128xbf16>
    %5 = vector.extract_strided_slice %1 {offsets = [1, 0], sizes = [15, 128], strides = [1, 1]} : vector<16x128xbf16> to vector<15x128xbf16>
    %6 = tpu.concatenate %5, %2 in 0 : vector<15x128xbf16>, vector<1x128xbf16> -> vector<16x128xbf16>
    %7 = tpu.concatenate %4, %1, %6 in 1 : vector<16x128xbf16>, vector<16x128xbf16>, vector<16x128xbf16> -> vector<16x384xbf16>
    %c0_2 = arith.constant 0 : index
    %c0_3 = arith.constant 0 : index
    %8 = vector.load %arg2[%c0_2, %c0_3] : memref<384x128xbf16, #tpu.memory_space<vmem>>, vector<384x128xbf16>
    %cst_4 = arith.constant dense<0.000000e+00> : vector<16x128xf32>
    %9 = tpu.matmul %7, %8, %cst_4 {dimension_numbers = #tpu.dot_dimension_numbers<[1], [0], [0], [1], [0, 0, 1, 1], [], []>} : vector<16x384xbf16>, vector<384x128xbf16>, vector<16x128xf32> -> vector<16x128xf32>
    %c0_5 = arith.constant 0 : index
    %c0_6 = arith.constant 0 : index
    %10 = vector.load %arg3[%c0_5, %c0_6] : memref<1x128xf32, #tpu.memory_space<vmem>>, vector<1x128xf32>
    %11 = vector.broadcast %10 : vector<1x128xf32> to vector<16x128xf32>
    %12 = arith.mulf %9, %11 : vector<16x128xf32>
    %c0_7 = arith.constant 0 : index
    %c0_8 = arith.constant 0 : index
    %13 = vector.load %arg4[%c0_7, %c0_8] : memref<1x128xf32, #tpu.memory_space<vmem>>, vector<1x128xf32>
    %14 = vector.broadcast %13 : vector<1x128xf32> to vector<16x128xf32>
    %15 = arith.addf %12, %14 : vector<16x128xf32>
    %cst_9 = arith.constant 0.000000e+00 : f32
    %16 = vector.broadcast %cst_9 : f32 to vector<16x128xf32>
    %17 = arith.maximumf %15, %16 : vector<16x128xf32>
    %18 = arith.truncf %17 : vector<16x128xf32> to vector<16x128xbf16>
    %cst_10 = arith.constant 0.000000e+00 : bf16
    %19 = vector.broadcast %cst_10 : bf16 to vector<1x128xbf16>
    %20 = vector.extract_strided_slice %18 {offsets = [0, 0], sizes = [15, 128], strides = [1, 1]} : vector<16x128xbf16> to vector<15x128xbf16>
    %21 = tpu.concatenate %19, %20 in 0 : vector<1x128xbf16>, vector<15x128xbf16> -> vector<16x128xbf16>
    %22 = vector.extract_strided_slice %18 {offsets = [1, 0], sizes = [15, 128], strides = [1, 1]} : vector<16x128xbf16> to vector<15x128xbf16>
    %23 = tpu.concatenate %22, %19 in 0 : vector<15x128xbf16>, vector<1x128xbf16> -> vector<16x128xbf16>
    %24 = tpu.concatenate %21, %18, %23 in 1 : vector<16x128xbf16>, vector<16x128xbf16>, vector<16x128xbf16> -> vector<16x384xbf16>
    %c0_11 = arith.constant 0 : index
    %c0_12 = arith.constant 0 : index
    %25 = vector.load %arg5[%c0_11, %c0_12] : memref<384x128xbf16, #tpu.memory_space<vmem>>, vector<384x128xbf16>
    %cst_13 = arith.constant dense<0.000000e+00> : vector<16x128xf32>
    %26 = tpu.matmul %24, %25, %cst_13 {dimension_numbers = #tpu.dot_dimension_numbers<[1], [0], [0], [1], [0, 0, 1, 1], [], []>} : vector<16x384xbf16>, vector<384x128xbf16>, vector<16x128xf32> -> vector<16x128xf32>
    %c0_14 = arith.constant 0 : index
    %c0_15 = arith.constant 0 : index
    %27 = vector.load %arg6[%c0_14, %c0_15] : memref<1x128xf32, #tpu.memory_space<vmem>>, vector<1x128xf32>
    %28 = vector.broadcast %27 : vector<1x128xf32> to vector<16x128xf32>
    %29 = arith.mulf %26, %28 : vector<16x128xf32>
    %c0_16 = arith.constant 0 : index
    %c0_17 = arith.constant 0 : index
    %30 = vector.load %arg7[%c0_16, %c0_17] : memref<1x128xf32, #tpu.memory_space<vmem>>, vector<1x128xf32>
    %31 = vector.broadcast %30 : vector<1x128xf32> to vector<16x128xf32>
    %32 = arith.addf %29, %31 : vector<16x128xf32>
    %33 = arith.extf %1 : vector<16x128xbf16> to vector<16x128xf32>
    %34 = arith.addf %32, %33 : vector<16x128xf32>
    %cst_18 = arith.constant 0.000000e+00 : f32
    %35 = vector.broadcast %cst_18 : f32 to vector<16x128xf32>
    %36 = arith.maximumf %34, %35 : vector<16x128xf32>
    %c0_19 = arith.constant 0 : index
    %c0_20 = arith.constant 0 : index
    %c0_21 = arith.constant 0 : index
    %37 = vector.load %arg8[%c0_19, %c0_20, %c0_21] : memref<1x16x128xf32, #tpu.memory_space<vmem>>, vector<1x16x128xf32>
    %38 = vector.shape_cast %37 : vector<1x16x128xf32> to vector<16x128xf32>
    %39 = vector.shape_cast %36 : vector<16x128xf32> to vector<1x16x128xf32>
    tpu.vector_store %arg8[%c0_19, %c0_20, %c0_21], %39 {strides = array<i32>} : memref<1x16x128xf32, #tpu.memory_space<vmem>>, vector<1x16x128xf32>,
    return
  }
  func.func @transform_0(%arg0: i32) -> (i32, i32, i32) {
    %c0_i32 = arith.constant 0 : i32
    %c0_i32_0 = arith.constant 0 : i32
    %c0_i32_1 = arith.constant 0 : i32
    return %arg0, %c0_i32, %c0_i32_0 : i32, i32, i32
  }
  func.func @transform_1(%arg0: i32) -> (i32, i32) {
    %c0_i32 = arith.constant 0 : i32
    %c0_i32_0 = arith.constant 0 : i32
    %c0_i32_1 = arith.constant 0 : i32
    return %c0_i32, %c0_i32_0 : i32, i32
  }
  func.func @transform_2(%arg0: i32) -> (i32, i32) {
    %c0_i32 = arith.constant 0 : i32
    %c0_i32_0 = arith.constant 0 : i32
    %c0_i32_1 = arith.constant 0 : i32
    return %c0_i32, %c0_i32_0 : i32, i32
  }
  func.func @transform_3(%arg0: i32) -> (i32, i32) {
    %c0_i32 = arith.constant 0 : i32
    %c0_i32_0 = arith.constant 0 : i32
    %c0_i32_1 = arith.constant 0 : i32
    return %c0_i32, %c0_i32_0 : i32, i32
  }
  func.func @transform_4(%arg0: i32) -> (i32, i32) {
    %c0_i32 = arith.constant 0 : i32
    %c0_i32_0 = arith.constant 0 : i32
    %c0_i32_1 = arith.constant 0 : i32
    return %c0_i32, %c0_i32_0 : i32, i32
  }
  func.func @transform_5(%arg0: i32) -> (i32, i32) {
    %c0_i32 = arith.constant 0 : i32
    %c0_i32_0 = arith.constant 0 : i32
    %c0_i32_1 = arith.constant 0 : i32
    return %c0_i32, %c0_i32_0 : i32, i32
  }
  func.func @transform_6(%arg0: i32) -> (i32, i32) {
    %c0_i32 = arith.constant 0 : i32
    %c0_i32_0 = arith.constant 0 : i32
    %c0_i32_1 = arith.constant 0 : i32
    return %c0_i32, %c0_i32_0 : i32, i32
  }
  func.func @transform_7(%arg0: i32) -> (i32, i32, i32) {
    %c0_i32 = arith.constant 0 : i32
    %c0_i32_0 = arith.constant 0 : i32
    %c0_i32_1 = arith.constant 0 : i32
    return %arg0, %c0_i32, %c0_i32_0 : i32, i32, i32
  }
}

</mosaic_0001>

<llo_original>
// kernel: tile.33
$region0: #{tile.33}
  #allocation0 [shape = 's32[1]{0}', space=sflag, size = 0x4, scoped, tag = 'scoped memory for tile.33']
  %s0 = inlined_call_operand.vmem [shape: f32[8], index: 0, kind: input, shape index: {}]
  %s1 = inlined_call_operand.vmem [shape: f32[16,8], index: 1, kind: output, shape index: {}]
  // Predicated region
  $region2: #{tile.33} parent=0 // pred_check
    _
  $region3: #{tile.33} parent=0 // pred_check_branch
    %3 = sbr.rel (0) target = $region5
  $region4: #{tile.33} parent=0 // pred_region
    _
  $region5: #{tile.33} parent=0 // pred_fallthru
    _
  %v4 = vld [vmem:[%s0] ss:$0 sm:$0xff]
  %5 = vst [vmem:[%s1] sm:$0xff] %v4
  %s6 = scalar_lea.vmem %s1, 8
  %7 = vst [vmem:[%s6] sm:$0xff] %v4

// kernel: tile.34
$region0: #{tile.34}
  %s0 = inlined_call_operand.vmem [shape: f32[16,8], index: 0, kind: input, shape index: {}]
  %s1 = inlined_call_operand.vmem [shape: f32[1,128], index: 1, kind: output, shape index: {}]
  $region1: #{tile.34} parent=0
    #allocation0 [shape = 'u8[4096]{0}', space=vmem, size = 0x1000, scoped, tag = 'scoped mem for output reshape']
    %v2 = vld [vmem:[%s0] sm:$0x1]
    %vm3 = vcmask 64512
    %4 = vst.msk [vmem:[#allocation0] sm:$0x1] %vm3, %v2
    %s5 = scalar_lea.vmem %s0, 15
    %v6 = vld [vmem:[%s5] sm:$0x1]
    %7 = vrot.lane.b32.xlu0 %v6, 120
    %v8 = vpop.permute.xlu0 %7
    %vm9 = vcmask 1048512
    %10 = vst.msk [vmem:[#allocation0] sm:$0x1] %vm9, %v8
    %s11 = scalar_lea.vmem %s0, 14
    %v12 = vld [vmem:[%s11] sm:$0x1]
    %13 = vrot.lane.b32.xlu0 %v12, 112
    %v14 = vpop.permute.xlu0 %13
    %vm15 = vcmask 982912
    %16 = vst.msk [vmem:[#allocation0] sm:$0x1] %vm15, %v14
    %s17 = scalar_lea.vmem %s0, 13
    %v18 = vld [vmem:[%s17] sm:$0x1]
    %19 = vrot.lane.b32.xlu0 %v18, 104
    %v20 = vpop.permute.xlu0 %19
    %vm21 = vcmask 917312
    %22 = vst.msk [vmem:[#allocation0] sm:$0x1] %vm21, %v20
    %s23 = scalar_lea.vmem %s0, 12
    %v24 = vld [vmem:[%s23] sm:$0x1]
    %25 = vrot.lane.b32.xlu0 %v24, 96
    %v26 = vpop.permute.xlu0 %25
    %vm27 = vcmask 851712
    %28 = vst.msk [vmem:[#allocation0] sm:$0x1] %vm27, %v26
    %s29 = scalar_lea.vmem %s0, 11
    %v30 = vld [vmem:[%s29] sm:$0x1]
    %31 = vrot.lane.b32.xlu0 %v30, 88
    %v32 = vpop.permute.xlu0 %31
    %vm33 = vcmask 786112
    %34 = vst.msk [vmem:[#allocation0] sm:$0x1] %vm33, %v32
    %s35 = scalar_lea.vmem %s0, 10
    %v36 = vld [vmem:[%s35] sm:$0x1]
    %37 = vrot.lane.b32.xlu0 %v36, 80
    %v38 = vpop.permute.xlu0 %37
    %vm39 = vcmask 720512
    %40 = vst.msk [vmem:[#allocation0] sm:$0x1] %vm39, %v38
    %s41 = scalar_lea.vmem %s0, 9
    %v42 = vld [vmem:[%s41] sm:$0x1]
    %43 = vrot.lane.b32.xlu0 %v42, 72
    %v44 = vpop.permute.xlu0 %43
    %vm45 = vcmask 654912
    %46 = vst.msk [vmem:[#allocation0] sm:$0x1] %vm45, %v44
    %s47 = scalar_lea.vmem %s0, 8
    %v48 = vld [vmem:[%s47] sm:$0x1]
    %49 = vrot.lane.b32.xlu0 %v48, 64
    %v50 = vpop.permute.xlu0 %49
    %vm51 = vcmask 589312
    %52 = vst.msk [vmem:[#allocation0] sm:$0x1] %vm51, %v50
    %s53 = scalar_lea.vmem %s0, 7
    %v54 = vld [vmem:[%s53] sm:$0x1]
    %55 = vrot.lane.b32.xlu0 %v54, 56
    %v56 = vpop.permute.xlu0 %55
    %vm57 = vcmask 523712
    %58 = vst.msk [vmem:[#allocation0] sm:$0x1] %vm57, %v56
    %s59 = scalar_lea.vmem %s0, 6
    %v60 = vld [vmem:[%s59] sm:$0x1]
    %61 = vrot.lane.b32.xlu0 %v60, 48
    %v62 = vpop.permute.xlu0 %61
    %vm63 = vcmask 458112
    %64 = vst.msk [vmem:[#allocation0] sm:$0x1] %vm63, %v62
    %s65 = scalar_lea.vmem %s0, 5
    %v66 = vld [vmem:[%s65] sm:$0x1]
    %67 = vrot.lane.b32.xlu0 %v66, 40
    %v68 = vpop.permute.xlu0 %67
    %vm69 = vcmask 392512
    %70 = vst.msk [vmem:[#allocation0] sm:$0x1] %vm69, %v68
    %s71 = scalar_lea.vmem %s0, 4
    %v72 = vld [vmem:[%s71] sm:$0x1]
    %73 = vrot.lane.b32.xlu0 %v72, 32
    %v74 = vpop.permute.xlu0 %73
    %vm75 = vcmask 326912
    %76 = vst.msk [vmem:[#allocation0] sm:$0x1] %vm75, %v74
    %s77 = scalar_lea.vmem %s0, 3
    %v78 = vld [vmem:[%s77] sm:$0x1]
    %79 = vrot.lane.b32.xlu0 %v78, 24
    %v80 = vpop.permute.xlu0 %79
    %vm81 = vcmask 261312
    %82 = vst.msk [vmem:[#allocation0] sm:$0x1] %vm81, %v80
    %s83 = scalar_lea.vmem %s0, 2
    %v84 = vld [vmem:[%s83] sm:$0x1]
    %85 = vrot.lane.b32.xlu0 %v84, 16
    %v86 = vpop.permute.xlu0 %85
    %vm87 = vcmask 195712
    %88 = vst.msk [vmem:[#allocation0] sm:$0x1] %vm87, %v86
    %s89 = scalar_lea.vmem %s0, 1
    %v90 = vld [vmem:[%s89] sm:$0x1]
    %91 = vrot.lane.b32.xlu0 %v90, 8
    %v92 = vpop.permute.xlu0 %91
    %vm93 = vcmask 130112
    %94 = vst.msk [vmem:[#allocation0] sm:$0x1] %vm93, %v92
    %s96 = ssub.s32 2, 1
    %v97 = vld [vmem:[#allocation0] sm:%s96]
    %s99 = ssub.s32 2, 1
    %100 = vst [vmem:[%s1] sm:%s99] %v97

// kernel: residual_block_pallas.1
$region0: #{residual_block_pallas.1}
  #allocation0 [shape = 'u32[]', space=smem, size = 0x4, offset = 0x4, fixed_abs, tag = 'smem constant byte address 0x4 - core index']
  #allocation1 [shape = 'u32[72,128]{1,0:T(1,128)}', space=vmem, size = 0x9000, scoped, tag = 'internal scratch']
  %s0 = inlined_call_operand.vmem [shape: bf16[2,16,128], index: 0, kind: input, shape index: {}]
  %s1 = inlined_call_operand.vmem [shape: bf16[384,128], index: 1, kind: input, shape index: {}]
  %s2 = inlined_call_operand.vmem [shape: f32[1,128], index: 2, kind: input, shape index: {}]
  %s3 = inlined_call_operand.vmem [shape: f32[1,128], index: 3, kind: input, shape index: {}]
  %s4 = inlined_call_operand.vmem [shape: bf16[384,128], index: 4, kind: input, shape index: {}]
  %s5 = inlined_call_operand.vmem [shape: f32[1,128], index: 5, kind: input, shape index: {}]
  %s6 = inlined_call_operand.vmem [shape: f32[1,128], index: 6, kind: input, shape index: {}]
  %s7 = inlined_call_operand.vmem [shape: f32[2,16,128], index: 7, kind: output, shape index: {}]
  %s8 = sld [smem:[#allocation0]]
  $region61: #{residual_block_pallas.1} parent=0
    _
  %s10 = ssub.s32 1, %s8
  %s11 = scalar_select 0, %s10, %s8
  loop: start=0, step=1, limit=4
  $region2: #{residual_block_pallas.1} parent=0 // loop_pre_header
    _
  $region3: #{residual_block_pallas.1} parent=0 // loop_header
    %s13 = sphi 0, %s17
    %p14 = scmp.ge.s32.totalorder %s13, 4
    %s23 = sphi 0, %s25
    %s26 = sphi 0, %s23
    %s27 = sphi 0, %s26
    %s43 = sphi 0, %s27
    %s47 = sphi 0, %s47
    %s49 = sphi 0, %s47
    %s50 = sphi 0, %s49
    %s64 = sphi 0, %s50
    %s68 = sphi 0, %s68
    %s70 = sphi 0, %s68
    %s71 = sphi 0, %s70
    %s85 = sphi 0, %s71
    %s89 = sphi 0, %s89
    %s91 = sphi 0, %s89
    %s92 = sphi 0, %s91
    %s106 = sphi 0, %s92
    %s110 = sphi 0, %s110
    %s112 = sphi 0, %s110
    %s113 = sphi 0, %s112
    %s127 = sphi 0, %s113
    %s131 = sphi 0, %s131
    %s133 = sphi 0, %s131
    %s134 = sphi 0, %s133
    %s148 = sphi 0, %s134
    %s152 = sphi 0, %s152
    %s154 = sphi 0, %s152
    %s155 = sphi 0, %s154
    %s169 = sphi 0, %s155
    %s175 = sphi 0, %s177
    %s178 = sphi 0, %s175
    %s179 = sphi 0, %s178
    %s195 = sphi 0, %s179
  $region4: #{residual_block_pallas.1} parent=0 // loop_header_branch
    %16 = sbr.rel (%p14) target = $region8
  $region5: #{residual_block_pallas.1} parent=0 // loop_body
    %s18 = ssub.s32 %s13, 1
    %s19 = ssub.s32 %s13, 2
    %s20 = sadd.s32 %s13, 1
    %s21 = ssub.s32 %s13, %s20
    %p22 = scmp.eq.s32.totalorder %s21, 0
    %s24 = sadd.s32 %s23, 1
    %s25 = scalar_select %p22, %s23, %s24
    %p28 = pneg %p22
    %p29 = scmp.eq.s32.totalorder %s13, 1
    %p30 = por %p28, %p29
    %p31 = scmp.ne.s32.totalorder %s23, %s26
    %p32 = scmp.eq.s32.totalorder %s13, 0
    %p33 = por %p31, %p32
    %p34 = scmp.ne.s32.totalorder %s23, %s26
    %p35 = scmp.eq.s32.totalorder %s18, 1
    %p36 = por %p34, %p35
    %p37 = scmp.ne.s32.totalorder %s26, %s27
    %p38 = scmp.eq.s32.totalorder %s18, 0
    %p39 = por %p37, %p38
    %p40 = scmp.ne.s32.totalorder %s26, %s27
    %p41 = scmp.eq.s32.totalorder %s19, 1
    %p42 = por %p40, %p41
    %p44 = scmp.ne.s32.totalorder %s27, %s43
    %p45 = scmp.eq.s32.totalorder %s19, 0
    %p46 = por %p44, %p45
    %s48 = sadd.s32 %s47, 1
    %p51 = scmp.eq.s32.totalorder %s13, 1
    %p52 = scmp.ne.s32.totalorder %s47, %s49
    %p53 = scmp.eq.s32.totalorder %s13, 0
    %p54 = por %p52, %p53
    %p55 = scmp.ne.s32.totalorder %s47, %s49
    %p56 = scmp.eq.s32.totalorder %s18, 1
    %p57 = por %p55, %p56
    %p58 = scmp.ne.s32.totalorder %s49, %s50
    %p59 = scmp.eq.s32.totalorder %s18, 0
    %p60 = por %p58, %p59
    %p61 = scmp.ne.s32.totalorder %s49, %s50
    %p62 = scmp.eq.s32.totalorder %s19, 1
    %p63 = por %p61, %p62
    %p65 = scmp.ne.s32.totalorder %s50, %s64
    %p66 = scmp.eq.s32.totalorder %s19, 0
    %p67 = por %p65, %p66
    %s69 = sadd.s32 %s68, 1
    %p72 = scmp.eq.s32.totalorder %s13, 1
    %p73 = scmp.ne.s32.totalorder %s68, %s70
    %p74 = scmp.eq.s32.totalorder %s13, 0
    %p75 = por %p73, %p74
    %p76 = scmp.ne.s32.totalorder %s68, %s70
    %p77 = scmp.eq.s32.totalorder %s18, 1
    %p78 = por %p76, %p77
    %p79 = scmp.ne.s32.totalorder %s70, %s71
    %p80 = scmp.eq.s32.totalorder %s18, 0
    %p81 = por %p79, %p80
    %p82 = scmp.ne.s32.totalorder %s70, %s71
    %p83 = scmp.eq.s32.totalorder %s19, 1
    %p84 = por %p82, %p83
    %p86 = scmp.ne.s32.totalorder %s71, %s85
    %p87 = scmp.eq.s32.totalorder %s19, 0
    %p88 = por %p86, %p87
    %s90 = sadd.s32 %s89, 1
    %p93 = scmp.eq.s32.totalorder %s13, 1
    %p94 = scmp.ne.s32.totalorder %s89, %s91
    %p95 = scmp.eq.s32.totalorder %s13, 0
    %p96 = por %p94, %p95
    %p97 = scmp.ne.s32.totalorder %s89, %s91
    %p98 = scmp.eq.s32.totalorder %s18, 1
    %p99 = por %p97, %p98
    %p100 = scmp.ne.s32.totalorder %s91, %s92
    %p101 = scmp.eq.s32.totalorder %s18, 0
    %p102 = por %p100, %p101
    %p103 = scmp.ne.s32.totalorder %s91, %s92
    %p104 = scmp.eq.s32.totalorder %s19, 1
    %p105 = por %p103, %p104
    %p107 = scmp.ne.s32.totalorder %s92, %s106
    %p108 = scmp.eq.s32.totalorder %s19, 0
    %p109 = por %p107, %p108
    %s111 = sadd.s32 %s110, 1
    %p114 = scmp.eq.s32.totalorder %s13, 1
    %p115 = scmp.ne.s32.totalorder %s110, %s112
    %p116 = scmp.eq.s32.totalorder %s13, 0
    %p117 = por %p115, %p116
    %p118 = scmp.ne.s32.totalorder %s110, %s112
    %p119 = scmp.eq.s32.totalorder %s18, 1
    %p120 = por %p118, %p119
    %p121 = scmp.ne.s32.totalorder %s112, %s113
    %p122 = scmp.eq.s32.totalorder %s18, 0
    %p123 = por %p121, %p122
    %p124 = scmp.ne.s32.totalorder %s112, %s113
    %p125 = scmp.eq.s32.totalorder %s19, 1
    %p126 = por %p124, %p125
    %p128 = scmp.ne.s32.totalorder %s113, %s127
    %p129 = scmp.eq.s32.totalorder %s19, 0
    %p130 = por %p128, %p129
    %s132 = sadd.s32 %s131, 1
    %p135 = scmp.eq.s32.totalorder %s13, 1
    %p136 = scmp.ne.s32.totalorder %s131, %s133
    %p137 = scmp.eq.s32.totalorder %s13, 0
    %p138 = por %p136, %p137
    %p139 = scmp.ne.s32.totalorder %s131, %s133
    %p140 = scmp.eq.s32.totalorder %s18, 1
    %p141 = por %p139, %p140
    %p142 = scmp.ne.s32.totalorder %s133, %s134
    %p143 = scmp.eq.s32.totalorder %s18, 0
    %p144 = por %p142, %p143
    %p145 = scmp.ne.s32.totalorder %s133, %s134
    %p146 = scmp.eq.s32.totalorder %s19, 1
    %p147 = por %p145, %p146
    %p149 = scmp.ne.s32.totalorder %s134, %s148
    %p150 = scmp.eq.s32.totalorder %s19, 0
    %p151 = por %p149, %p150
    %s153 = sadd.s32 %s152, 1
    %p156 = scmp.eq.s32.totalorder %s13, 1
    %p157 = scmp.ne.s32.totalorder %s152, %s154
    %p158 = scmp.eq.s32.totalorder %s13, 0
    %p159 = por %p157, %p158
    %p160 = scmp.ne.s32.totalorder %s152, %s154
    %p161 = scmp.eq.s32.totalorder %s18, 1
    %p162 = por %p160, %p161
    %p163 = scmp.ne.s32.totalorder %s154, %s155
    %p164 = scmp.eq.s32.totalorder %s18, 0
    %p165 = por %p163, %p164
    %p166 = scmp.ne.s32.totalorder %s154, %s155
    %p167 = scmp.eq.s32.totalorder %s19, 1
    %p168 = por %p166, %p167
    %p170 = scmp.ne.s32.totalorder %s155, %s169
    %p171 = scmp.eq.s32.totalorder %s19, 0
    %p172 = por %p170, %p171
    %s173 = ssub.s32 %s13, %s20
    %p174 = scmp.eq.s32.totalorder %s173, 0
    %s176 = sadd.s32 %s175, 1
    %s177 = scalar_select %p174, %s175, %s176
    %p180 = pneg %p174
    %p181 = scmp.eq.s32.totalorder %s13, 1
    %p182 = por %p180, %p181
    %p183 = scmp.ne.s32.totalorder %s175, %s178
    %p184 = scmp.eq.s32.totalorder %s13, 0
    %p185 = por %p183, %p184
    %p186 = scmp.ne.s32.totalorder %s175, %s178
    %p187 = scmp.eq.s32.totalorder %s18, 1
    %p188 = por %p186, %p187
    %p189 = scmp.ne.s32.totalorder %s178, %s179
    %p190 = scmp.eq.s32.totalorder %s18, 0
    %p191 = por %p189, %p190
    %p192 = scmp.ne.s32.totalorder %s178, %s179
    %p193 = scmp.eq.s32.totalorder %s19, 1
    %p194 = por %p192, %p193
    %p196 = scmp.ne.s32.totalorder %s179, %s195
    %p197 = scmp.eq.s32.totalorder %s19, 0
    %p198 = por %p196, %p197
    %p199 = scmp.le.s32.totalorder 1, %s13
    %p200 = scmp.lt.s32.totalorder %s13, 3
    %p201 = pnand %p199, %p200
    %p202 = pneg %p201
    // Predicated region
    $region9: #{residual_block_pallas.1} parent=5 // pred_check
      _
    $region10: #{residual_block_pallas.1} parent=5 // pred_check_branch
      %204 = sbr.rel (%p201) target = $region12
    $region11: #{residual_block_pallas.1} parent=5 // pred_region
      %s205 = ssub.s32 %s13, 1
      // Predicated region
      $region13: #{residual_block_pallas.1} parent=11 // pred_check
        %p206 = pneg %p60
      $region14: #{residual_block_pallas.1} parent=11 // pred_check_branch
        %208 = sbr.rel (%p206) target = $region16
      $region15: #{residual_block_pallas.1} parent=11 // pred_region
        _
      $region16: #{residual_block_pallas.1} parent=11 // pred_fallthru
        _
      // Predicated region
      $region17: #{residual_block_pallas.1} parent=11 // pred_check
        %p209 = pneg %p81
      $region18: #{residual_block_pallas.1} parent=11 // pred_check_branch
        %211 = sbr.rel (%p209) target = $region20
      $region19: #{residual_block_pallas.1} parent=11 // pred_region
        _
      $region20: #{residual_block_pallas.1} parent=11 // pred_fallthru
        _
      // Predicated region
      $region21: #{residual_block_pallas.1} parent=11 // pred_check
        %p212 = pneg %p102
      $region22: #{residual_block_pallas.1} parent=11 // pred_check_branch
        %214 = sbr.rel (%p212) target = $region24
      $region23: #{residual_block_pallas.1} parent=11 // pred_region
        _
      $region24: #{residual_block_pallas.1} parent=11 // pred_fallthru
        _
      // Predicated region
      $region25: #{residual_block_pallas.1} parent=11 // pred_check
        %p215 = pneg %p123
      $region26: #{residual_block_pallas.1} parent=11 // pred_check_branch
        %217 = sbr.rel (%p215) target = $region28
      $region27: #{residual_block_pallas.1} parent=11 // pred_region
        _
      $region28: #{residual_block_pallas.1} parent=11 // pred_fallthru
        _
      // Predicated region
      $region29: #{residual_block_pallas.1} parent=11 // pred_check
        %p218 = pneg %p144
      $region30: #{residual_block_pallas.1} parent=11 // pred_check_branch
        %220 = sbr.rel (%p218) target = $region32
      $region31: #{residual_block_pallas.1} parent=11 // pred_region
        _
      $region32: #{residual_block_pallas.1} parent=11 // pred_fallthru
        _
      // Predicated region
      $region33: #{residual_block_pallas.1} parent=11 // pred_check
        %p221 = pneg %p165
      $region34: #{residual_block_pallas.1} parent=11 // pred_check_branch
        %223 = sbr.rel (%p221) target = $region36
      $region35: #{residual_block_pallas.1} parent=11 // pred_region
        _
      $region36: #{residual_block_pallas.1} parent=11 // pred_fallthru
        _
    $region12: #{residual_block_pallas.1} parent=5 // pred_fallthru
      _
    %p224 = scmp.lt.s32.totalorder %s13, 2
    // Predicated region
    $region37: #{residual_block_pallas.1} parent=5 // pred_check
      %p225 = pneg %p224
    $region38: #{residual_block_pallas.1} parent=5 // pred_check_branch
      %227 = sbr.rel (%p225) target = $region40
    $region39: #{residual_block_pallas.1} parent=5 // pred_region
      // Predicated region
      $region41: #{residual_block_pallas.1} parent=39 // pred_check
        %p228 = pneg %p33
      $region42: #{residual_block_pallas.1} parent=39 // pred_check_branch
        %230 = sbr.rel (%p228) target = $region44
      $region43: #{residual_block_pallas.1} parent=39 // pred_region
        %p231 = scmp.lt.s32.totalorder %s13, 1
        %s232 = scalar_select %p231, %s13, 1
        %s233 = smul.addr %s232, 2
        %s234 = smul.addr %s233, 4
        %s235 = scalar_lea.vmem %s0, %s234
      $region44: #{residual_block_pallas.1} parent=39 // pred_fallthru
        _
    $region40: #{residual_block_pallas.1} parent=5 // pred_fallthru
      _
    %p236 = scmp.le.s32.totalorder 1, %s13
    %p237 = scmp.lt.s32.totalorder %s13, 3
    %p238 = pnand %p236, %p237
    %p239 = pneg %p238
    // Predicated region
    $region45: #{residual_block_pallas.1} parent=5 // pred_check
      _
    $region46: #{residual_block_pallas.1} parent=5 // pred_check_branch
      %241 = sbr.rel (%p238) target = $region48
    $region47: #{residual_block_pallas.1} parent=5 // pred_region
      %s242 = ssub.s32 %s13, 1
      %p243 = scmp.lt.s32.totalorder %s18, 1
      %s244 = scalar_select %p243, %s18, 1
      %s245 = smul.addr %s244, 2
      %s246 = smul.addr %s245, 4
      %s247 = scalar_lea.vmem %s0, %s246
      %p248 = pneg %p39
      %p249 = pneg %p36
      %p250 = pneg %p60
      %p251 = pneg %p57
      %p252 = pneg %p81
      %p253 = pneg %p78
      %p254 = pneg %p102
      %p255 = pneg %p99
      %p256 = pneg %p123
      %p257 = pneg %p120
      %p258 = pneg %p144
      %p259 = pneg %p141
      %p260 = pneg %p165
      %p261 = pneg %p162
      %p262 = pneg %p191
      %p263 = pneg %p188
      %p264 = scmp.lt.s32.totalorder %s18, 1
      %s265 = scalar_select %p264, %s18, 1
      %s266 = smul.addr %s265, 2
      %s267 = smul.addr %s266, 8
      %s268 = scalar_lea.vmem %s7, %s267
      %p269 = scmp.lt.s32.totalorder %s18, 1
      %s270 = scalar_select %p269, %s18, 1
      %s271 = smul.addr %s270, 2
      %s272 = smul.addr %s271, 4
      %s273 = scalar_lea.vmem %s0, %s272
      %p274 = scmp.lt.s32.totalorder %s18, 1
      %s275 = scalar_select %p274, %s18, 1
      %s276 = smul.addr %s275, 2
      %s277 = smul.addr %s276, 8
      %s278 = scalar_lea.vmem %s7, %s277
      %v280 = vld [vmem:[%s273] sm:$0xf]
      %v281 = vld [vmem:[%s273 + $0x4] sm:$0xf]
      %v284 = vunpack.c.l.b16 %v280
      %v285 = vunpack.c.l.b16 %v281
      %v286 = vpack.c.b16 %v285, %v284
      %v288 = vshrl.u32 %v286, 16
      %v290 = vrot.slane %v288, 7
      %v291 = vshll.u32 %v286, 16
      %v293 = vor.u32 %v290, %v291
      %vm295 = vcmask 1040384
      %vm296 = vsmask.f32 256
      %vm297 = vmand %vm295, %vm296
      %v298 = vsel %vm297, 0, %v293
      %v299 = vrot.slane %v291, 1
      %v300 = vor.u32 %v288, %v299
      %vm302 = vcmask 1047552
      %vm303 = vsmask.f32 7424
      %vm304 = vmand %vm302, %vm303
      %v305 = vsel %vm304, %v300, 0
      %v307 = vld [vmem:[%s1] sm:$0xf]
      %v308 = vld [vmem:[%s1 + $0x4] sm:$0xf]
      %v309 = vld [vmem:[%s1 + $0x8] sm:$0xf]
      %v310 = vld [vmem:[%s1 + $0xc] sm:$0xf]
      %v311 = vld [vmem:[%s1 + $0x10] sm:$0xf]
      %v312 = vld [vmem:[%s1 + $0x14] sm:$0xf]
      %v313 = vld [vmem:[%s1 + $0x18] sm:$0xf]
      %v314 = vld [vmem:[%s1 + $0x1c] sm:$0xf]
      %v315 = vld [vmem:[%s1 + $0x20] sm:$0xf]
      %v316 = vld [vmem:[%s1 + $0x24] sm:$0xf]
      %v317 = vld [vmem:[%s1 + $0x28] sm:$0xf]
      %v318 = vld [vmem:[%s1 + $0x2c] sm:$0xf]
      %v319 = vld [vmem:[%s1 + $0x30] sm:$0xf]
      %v320 = vld [vmem:[%s1 + $0x34] sm:$0xf]
      %v321 = vld [vmem:[%s1 + $0x38] sm:$0xf]
      %v322 = vld [vmem:[%s1 + $0x3c] sm:$0xf]
      %v323 = vld [vmem:[%s1 + $0x40] sm:$0xf]
      %v324 = vld [vmem:[%s1 + $0x44] sm:$0xf]
      %v325 = vld [vmem:[%s1 + $0x48] sm:$0xf]
      %v326 = vld [vmem:[%s1 + $0x4c] sm:$0xf]
      %v327 = vld [vmem:[%s1 + $0x50] sm:$0xf]
      %v328 = vld [vmem:[%s1 + $0x54] sm:$0xf]
      %v329 = vld [vmem:[%s1 + $0x58] sm:$0xf]
      %v330 = vld [vmem:[%s1 + $0x5c] sm:$0xf]
      %v331 = vld [vmem:[%s1 + $0x60] sm:$0xf]
      %v332 = vld [vmem:[%s1 + $0x64] sm:$0xf]
      %v333 = vld [vmem:[%s1 + $0x68] sm:$0xf]
      %v334 = vld [vmem:[%s1 + $0x6c] sm:$0xf]
      %v335 = vld [vmem:[%s1 + $0x70] sm:$0xf]
      %v336 = vld [vmem:[%s1 + $0x74] sm:$0xf]
      %v337 = vld [vmem:[%s1 + $0x78] sm:$0xf]
      %v338 = vld [vmem:[%s1 + $0x7c] sm:$0xf]
      %v339 = vld [vmem:[%s1 + $0x80] sm:$0xf]
      %v340 = vld [vmem:[%s1 + $0x84] sm:$0xf]
      %v341 = vld [vmem:[%s1 + $0x88] sm:$0xf]
      %v342 = vld [vmem:[%s1 + $0x8c] sm:$0xf]
      %v343 = vld [vmem:[%s1 + $0x90] sm:$0xf]
      %v344 = vld [vmem:[%s1 + $0x94] sm:$0xf]
      %v345 = vld [vmem:[%s1 + $0x98] sm:$0xf]
      %v346 = vld [vmem:[%s1 + $0x9c] sm:$0xf]
      %v347 = vld [vmem:[%s1 + $0xa0] sm:$0xf]
      %v348 = vld [vmem:[%s1 + $0xa4] sm:$0xf]
      %v349 = vld [vmem:[%s1 + $0xa8] sm:$0xf]
      %v350 = vld [vmem:[%s1 + $0xac] sm:$0xf]
      %v351 = vld [vmem:[%s1 + $0xb0] sm:$0xf]
      %v352 = vld [vmem:[%s1 + $0xb4] sm:$0xf]
      %v353 = vld [vmem:[%s1 + $0xb8] sm:$0xf]
      %v354 = vld [vmem:[%s1 + $0xbc] sm:$0xf]
      %v403 = vunpack.c.l.b16 %v307
      %v404 = vunpack.c.l.b16 %v308
      %v405 = vunpack.c.l.b16 %v309
      %v406 = vunpack.c.l.b16 %v310
      %v407 = vunpack.c.l.b16 %v311
      %v408 = vunpack.c.l.b16 %v312
      %v409 = vunpack.c.l.b16 %v313
      %v410 = vunpack.c.l.b16 %v314
      %v411 = vunpack.c.l.b16 %v315
      %v412 = vunpack.c.l.b16 %v316
      %v413 = vunpack.c.l.b16 %v317
      %v414 = vunpack.c.l.b16 %v318
      %v415 = vunpack.c.l.b16 %v319
      %v416 = vunpack.c.l.b16 %v320
      %v417 = vunpack.c.l.b16 %v321
      %v418 = vunpack.c.l.b16 %v322
      %v419 = vunpack.c.l.b16 %v323
      %v420 = vunpack.c.l.b16 %v324
      %v421 = vunpack.c.l.b16 %v325
      %v422 = vunpack.c.l.b16 %v326
      %v423 = vunpack.c.l.b16 %v327
      %v424 = vunpack.c.l.b16 %v328
      %v425 = vunpack.c.l.b16 %v329
      %v426 = vunpack.c.l.b16 %v330
      %v427 = vunpack.c.l.b16 %v331
      %v428 = vunpack.c.l.b16 %v332
      %v429 = vunpack.c.l.b16 %v333
      %v430 = vunpack.c.l.b16 %v334
      %v431 = vunpack.c.l.b16 %v335
      %v432 = vunpack.c.l.b16 %v336
      %v433 = vunpack.c.l.b16 %v337
      %v434 = vunpack.c.l.b16 %v338
      %v435 = vunpack.c.l.b16 %v339
      %v436 = vunpack.c.l.b16 %v340
      %v437 = vunpack.c.l.b16 %v341
      %v438 = vunpack.c.l.b16 %v342
      %v439 = vunpack.c.l.b16 %v343
      %v440 = vunpack.c.l.b16 %v344
      %v441 = vunpack.c.l.b16 %v345
      %v442 = vunpack.c.l.b16 %v346
      %v443 = vunpack.c.l.b16 %v347
      %v444 = vunpack.c.l.b16 %v348
      %v445 = vunpack.c.l.b16 %v349
      %v446 = vunpack.c.l.b16 %v350
      %v447 = vunpack.c.l.b16 %v351
      %v448 = vunpack.c.l.b16 %v352
      %v449 = vunpack.c.l.b16 %v353
      %v450 = vunpack.c.l.b16 %v354
      %v451 = vpack.c.b16 %v404, %v403
      %v452 = vpack.c.b16 %v406, %v405
      %v453 = vpack.c.b16 %v408, %v407
      %v454 = vpack.c.b16 %v410, %v409
      %v455 = vpack.c.b16 %v412, %v411
      %v456 = vpack.c.b16 %v414, %v413
      %v457 = vpack.c.b16 %v416, %v415
      %v458 = vpack.c.b16 %v418, %v417
      %v459 = vpack.c.b16 %v420, %v419
      %v460 = vpack.c.b16 %v422, %v421
      %v461 = vpack.c.b16 %v424, %v423
      %v462 = vpack.c.b16 %v426, %v425
      %v463 = vpack.c.b16 %v428, %v427
      %v464 = vpack.c.b16 %v430, %v429
      %v465 = vpack.c.b16 %v432, %v431
      %v466 = vpack.c.b16 %v434, %v433
      %v467 = vpack.c.b16 %v436, %v435
      %v468 = vpack.c.b16 %v438, %v437
      %v469 = vpack.c.b16 %v440, %v439
      %v470 = vpack.c.b16 %v442, %v441
      %v471 = vpack.c.b16 %v444, %v443
      %v472 = vpack.c.b16 %v446, %v445
      %v473 = vpack.c.b16 %v448, %v447
      %v474 = vpack.c.b16 %v450, %v449
      %499 = vmatpush.bf16.msra.mxu0 %v458
      %500 = vmatpush.bf16.msra.mxu0 %v457
      %501 = vmatpush.bf16.msra.mxu0 %v456
      %502 = vmatpush.bf16.msra.mxu0 %v455
      %503 = vmatpush.bf16.msra.mxu0 %v454
      %504 = vmatpush.bf16.msra.mxu0 %v453
      %505 = vmatpush.bf16.msra.mxu0 %v452
      %506 = vmatpush.bf16.msra.mxu0 %v451
      %507 = vmatmul.bf16.gmra.mxu0 %v298
      %v508 = vpop.f32.mrf.mxu0
      %v509 = vadd.f32 0.0, %v508
      %v510 = vpop.f32.mrf.mxu0
      %v511 = vadd.f32 0.0, %v510
      %512 = vdwg.mxu0
      %513 = vmatpush.bf16.msra.mxu0 %v466
      %514 = vmatpush.bf16.msra.mxu0 %v465
      %515 = vmatpush.bf16.msra.mxu0 %v464
      %516 = vmatpush.bf16.msra.mxu0 %v463
      %517 = vmatpush.bf16.msra.mxu0 %v462
      %518 = vmatpush.bf16.msra.mxu0 %v461
      %519 = vmatpush.bf16.msra.mxu0 %v460
      %520 = vmatpush.bf16.msra.mxu0 %v459
      %521 = vmatmul.bf16.gmra.mxu0 %v286
      %v522 = vpop.f32.mrf.mxu0
      %v523 = vadd.f32 %v509, %v522
      %v524 = vpop.f32.mrf.mxu0
      %v525 = vadd.f32 %v511, %v524
      %526 = vdwg.mxu0
      %527 = vmatpush.bf16.msra.mxu0 %v474
      %528 = vmatpush.bf16.msra.mxu0 %v473
      %529 = vmatpush.bf16.msra.mxu0 %v472
      %530 = vmatpush.bf16.msra.mxu0 %v471
      %531 = vmatpush.bf16.msra.mxu0 %v470
      %532 = vmatpush.bf16.msra.mxu0 %v469
      %533 = vmatpush.bf16.msra.mxu0 %v468
      %534 = vmatpush.bf16.msra.mxu0 %v467
      %535 = vmatmul.bf16.gmra.mxu0 %v305
      %v536 = vpop.f32.mrf.mxu0
      %v537 = vadd.f32 %v523, %v536
      %v538 = vpop.f32.mrf.mxu0
      %v539 = vadd.f32 %v525, %v538
      %540 = vdwg.mxu0
      %v541 = vld [vmem:[%s2] sm:$0x1]
      %v543 = vperm.slane %v541, 0
      %v545 = vmul.f32 %v537, %v543
      %v546 = vmul.f32 %v539, %v543
      %v547 = vld [vmem:[%s3] sm:$0x1]
      %v549 = vperm.slane %v547, 0
      %v551 = vadd.f32 %v545, %v549
      %v552 = vadd.f32 %v546, %v549
      %v553 = vmax.f32 %v551, 0.0
      %v554 = vmax.f32 %v552, 0.0
      %v555 = vpack.c.bf16 %v553, %v553
      %v556 = vpack.c.bf16 %v554, %v554
      %v559 = vunpack.c.l.b16 %v555
      %v560 = vunpack.c.l.b16 %v556
      %v561 = vpack.c.b16 %v560, %v559
      %v563 = vshrl.u32 %v561, 16
      %v565 = vrot.slane %v563, 7
      %v566 = vshll.u32 %v561, 16
      %v568 = vor.u32 %v565, %v566
      %v570 = vsel %vm297, 0, %v568
      %v571 = vrot.slane %v566, 1
      %v572 = vor.u32 %v563, %v571
      %v574 = vsel %vm304, %v572, 0
      %v576 = vld [vmem:[%s4] sm:$0xf]
      %v577 = vld [vmem:[%s4 + $0x4] sm:$0xf]
      %v578 = vld [vmem:[%s4 + $0x8] sm:$0xf]
      %v579 = vld [vmem:[%s4 + $0xc] sm:$0xf]
      %v580 = vld [vmem:[%s4 + $0x10] sm:$0xf]
      %v581 = vld [vmem:[%s4 + $0x14] sm:$0xf]
      %v582 = vld [vmem:[%s4 + $0x18] sm:$0xf]
      %v583 = vld [vmem:[%s4 + $0x1c] sm:$0xf]
      %v584 = vld [vmem:[%s4 + $0x20] sm:$0xf]
      %v585 = vld [vmem:[%s4 + $0x24] sm:$0xf]
      %v586 = vld [vmem:[%s4 + $0x28] sm:$0xf]
      %v587 = vld [vmem:[%s4 + $0x2c] sm:$0xf]
      %v588 = vld [vmem:[%s4 + $0x30] sm:$0xf]
      %v589 = vld [vmem:[%s4 + $0x34] sm:$0xf]
      %v590 = vld [vmem:[%s4 + $0x38] sm:$0xf]
      %v591 = vld [vmem:[%s4 + $0x3c] sm:$0xf]
      %v592 = vld [vmem:[%s4 + $0x40] sm:$0xf]
      %v593 = vld [vmem:[%s4 + $0x44] sm:$0xf]
      %v594 = vld [vmem:[%s4 + $0x48] sm:$0xf]
      %v595 = vld [vmem:[%s4 + $0x4c] sm:$0xf]
      %v596 = vld [vmem:[%s4 + $0x50] sm:$0xf]
      %v597 = vld [vmem:[%s4 + $0x54] sm:$0xf]
      %v598 = vld [vmem:[%s4 + $0x58] sm:$0xf]
      %v599 = vld [vmem:[%s4 + $0x5c] sm:$0xf]
      %v600 = vld [vmem:[%s4 + $0x60] sm:$0xf]
      %v601 = vld [vmem:[%s4 + $0x64] sm:$0xf]
      %v602 = vld [vmem:[%s4 + $0x68] sm:$0xf]
      %v603 = vld [vmem:[%s4 + $0x6c] sm:$0xf]
      %v604 = vld [vmem:[%s4 + $0x70] sm:$0xf]
      %v605 = vld [vmem:[%s4 + $0x74] sm:$0xf]
      %v606 = vld [vmem:[%s4 + $0x78] sm:$0xf]
      %v607 = vld [vmem:[%s4 + $0x7c] sm:$0xf]
      %v608 = vld [vmem:[%s4 + $0x80] sm:$0xf]
      %v609 = vld [vmem:[%s4 + $0x84] sm:$0xf]
      %v610 = vld [vmem:[%s4 + $0x88] sm:$0xf]
      %v611 = vld [vmem:[%s4 + $0x8c] sm:$0xf]
      %v612 = vld [vmem:[%s4 + $0x90] sm:$0xf]
      %v613 = vld [vmem:[%s4 + $0x94] sm:$0xf]
      %v614 = vld [vmem:[%s4 + $0x98] sm:$0xf]
      %v615 = vld [vmem:[%s4 + $0x9c] sm:$0xf]
      %v616 = vld [vmem:[%s4 + $0xa0] sm:$0xf]
      %v617 = vld [vmem:[%s4 + $0xa4] sm:$0xf]
      %v618 = vld [vmem:[%s4 + $0xa8] sm:$0xf]
      %v619 = vld [vmem:[%s4 + $0xac] sm:$0xf]
      %v620 = vld [vmem:[%s4 + $0xb0] sm:$0xf]
      %v621 = vld [vmem:[%s4 + $0xb4] sm:$0xf]
      %v622 = vld [vmem:[%s4 + $0xb8] sm:$0xf]
      %v623 = vld [vmem:[%s4 + $0xbc] sm:$0xf]
      %v672 = vunpack.c.l.b16 %v576
      %v673 = vunpack.c.l.b16 %v577
      %v674 = vunpack.c.l.b16 %v578
      %v675 = vunpack.c.l.b16 %v579
      %v676 = vunpack.c.l.b16 %v580
      %v677 = vunpack.c.l.b16 %v581
      %v678 = vunpack.c.l.b16 %v582
      %v679 = vunpack.c.l.b16 %v583
      %v680 = vunpack.c.l.b16 %v584
      %v681 = vunpack.c.l.b16 %v585
      %v682 = vunpack.c.l.b16 %v586
      %v683 = vunpack.c.l.b16 %v587
      %v684 = vunpack.c.l.b16 %v588
      %v685 = vunpack.c.l.b16 %v589
      %v686 = vunpack.c.l.b16 %v590
      %v687 = vunpack.c.l.b16 %v591
      %v688 = vunpack.c.l.b16 %v592
      %v689 = vunpack.c.l.b16 %v593
      %v690 = vunpack.c.l.b16 %v594
      %v691 = vunpack.c.l.b16 %v595
      %v692 = vunpack.c.l.b16 %v596
      %v693 = vunpack.c.l.b16 %v597
      %v694 = vunpack.c.l.b16 %v598
      %v695 = vunpack.c.l.b16 %v599
      %v696 = vunpack.c.l.b16 %v600
      %v697 = vunpack.c.l.b16 %v601
      %v698 = vunpack.c.l.b16 %v602
      %v699 = vunpack.c.l.b16 %v603
      %v700 = vunpack.c.l.b16 %v604
      %v701 = vunpack.c.l.b16 %v605
      %v702 = vunpack.c.l.b16 %v606
      %v703 = vunpack.c.l.b16 %v607
      %v704 = vunpack.c.l.b16 %v608
      %v705 = vunpack.c.l.b16 %v609
      %v706 = vunpack.c.l.b16 %v610
      %v707 = vunpack.c.l.b16 %v611
      %v708 = vunpack.c.l.b16 %v612
      %v709 = vunpack.c.l.b16 %v613
      %v710 = vunpack.c.l.b16 %v614
      %v711 = vunpack.c.l.b16 %v615
      %v712 = vunpack.c.l.b16 %v616
      %v713 = vunpack.c.l.b16 %v617
      %v714 = vunpack.c.l.b16 %v618
      %v715 = vunpack.c.l.b16 %v619
      %v716 = vunpack.c.l.b16 %v620
      %v717 = vunpack.c.l.b16 %v621
      %v718 = vunpack.c.l.b16 %v622
      %v719 = vunpack.c.l.b16 %v623
      %v720 = vpack.c.b16 %v673, %v672
      %v721 = vpack.c.b16 %v675, %v674
      %v722 = vpack.c.b16 %v677, %v676
      %v723 = vpack.c.b16 %v679, %v678
      %v724 = vpack.c.b16 %v681, %v680
      %v725 = vpack.c.b16 %v683, %v682
      %v726 = vpack.c.b16 %v685, %v684
      %v727 = vpack.c.b16 %v687, %v686
      %v728 = vpack.c.b16 %v689, %v688
      %v729 = vpack.c.b16 %v691, %v690
      %v730 = vpack.c.b16 %v693, %v692
      %v731 = vpack.c.b16 %v695, %v694
      %v732 = vpack.c.b16 %v697, %v696
      %v733 = vpack.c.b16 %v699, %v698
      %v734 = vpack.c.b16 %v701, %v700
      %v735 = vpack.c.b16 %v703, %v702
      %v736 = vpack.c.b16 %v705, %v704
      %v737 = vpack.c.b16 %v707, %v706
      %v738 = vpack.c.b16 %v709, %v708
      %v739 = vpack.c.b16 %v711, %v710
      %v740 = vpack.c.b16 %v713, %v712
      %v741 = vpack.c.b16 %v715, %v714
      %v742 = vpack.c.b16 %v717, %v716
      %v743 = vpack.c.b16 %v719, %v718
      %768 = vmatpush.bf16.msra.mxu0 %v727
      %769 = vmatpush.bf16.msra.mxu0 %v726
      %770 = vmatpush.bf16.msra.mxu0 %v725
      %771 = vmatpush.bf16.msra.mxu0 %v724
      %772 = vmatpush.bf16.msra.mxu0 %v723
      %773 = vmatpush.bf16.msra.mxu0 %v722
      %774 = vmatpush.bf16.msra.mxu0 %v721
      %775 = vmatpush.bf16.msra.mxu0 %v720
      %776 = vmatmul.bf16.gmra.mxu0 %v570
      %v777 = vpop.f32.mrf.mxu0
      %v778 = vadd.f32 0.0, %v777
      %v779 = vpop.f32.mrf.mxu0
      %v780 = vadd.f32 0.0, %v779
      %781 = vdwg.mxu0
      %782 = vmatpush.bf16.msra.mxu0 %v735
      %783 = vmatpush.bf16.msra.mxu0 %v734
      %784 = vmatpush.bf16.msra.mxu0 %v733
      %785 = vmatpush.bf16.msra.mxu0 %v732
      %786 = vmatpush.bf16.msra.mxu0 %v731
      %787 = vmatpush.bf16.msra.mxu0 %v730
      %788 = vmatpush.bf16.msra.mxu0 %v729
      %789 = vmatpush.bf16.msra.mxu0 %v728
      %790 = vmatmul.bf16.gmra.mxu0 %v561
      %v791 = vpop.f32.mrf.mxu0
      %v792 = vadd.f32 %v778, %v791
      %v793 = vpop.f32.mrf.mxu0
      %v794 = vadd.f32 %v780, %v793
      %795 = vdwg.mxu0
      %796 = vmatpush.bf16.msra.mxu0 %v743
      %797 = vmatpush.bf16.msra.mxu0 %v742
      %798 = vmatpush.bf16.msra.mxu0 %v741
      %799 = vmatpush.bf16.msra.mxu0 %v740
      %800 = vmatpush.bf16.msra.mxu0 %v739
      %801 = vmatpush.bf16.msra.mxu0 %v738
      %802 = vmatpush.bf16.msra.mxu0 %v737
      %803 = vmatpush.bf16.msra.mxu0 %v736
      %804 = vmatmul.bf16.gmra.mxu0 %v574
      %v805 = vpop.f32.mrf.mxu0
      %v806 = vadd.f32 %v792, %v805
      %v807 = vpop.f32.mrf.mxu0
      %v808 = vadd.f32 %v794, %v807
      %809 = vdwg.mxu0
      %v810 = vld [vmem:[%s5] sm:$0x1]
      %v812 = vperm.slane %v810, 0
      %v814 = vmul.f32 %v806, %v812
      %v815 = vmul.f32 %v808, %v812
      %v816 = vld [vmem:[%s6] sm:$0x1]
      %v818 = vperm.slane %v816, 0
      %v820 = vadd.f32 %v814, %v818
      %v821 = vadd.f32 %v815, %v818
      %v822 = vunpack.c.l.bf16 %v280
      %v823 = vunpack.c.l.bf16 %v281
      %v824 = vadd.f32 %v820, %v822
      %v825 = vadd.f32 %v821, %v823
      %v826 = vmax.f32 %v824, 0.0
      %v827 = vmax.f32 %v825, 0.0
      %828 = vst [vmem:[%s278] sm:$0xff] %v826
      %829 = vst [vmem:[%s278 + $0x8] sm:$0xff] %v827
      %p830 = scmp.lt.s32.totalorder %s18, 1
      %s831 = scalar_select %p830, %s18, 1
      %s832 = smul.addr %s831, 2
      %s833 = smul.addr %s832, 8
      %s834 = scalar_lea.vmem %s7, %s833
      // Predicated region
      $region49: #{residual_block_pallas.1} parent=47 // pred_check
        %p835 = pneg %p188
      $region50: #{residual_block_pallas.1} parent=47 // pred_check_branch
        %837 = sbr.rel (%p835) target = $region52
      $region51: #{residual_block_pallas.1} parent=47 // pred_region
        _
      $region52: #{residual_block_pallas.1} parent=47 // pred_fallthru
        _
    $region48: #{residual_block_pallas.1} parent=5 // pred_fallthru
      _
    %p838 = scmp.le.s32.totalorder 2, %s13
    // Predicated region
    $region53: #{residual_block_pallas.1} parent=5 // pred_check
      %p839 = pneg %p838
    $region54: #{residual_block_pallas.1} parent=5 // pred_check_branch
      %841 = sbr.rel (%p839) target = $region56
    $region55: #{residual_block_pallas.1} parent=5 // pred_region
      %s842 = ssub.s32 %s13, 2
      // Predicated region
      $region57: #{residual_block_pallas.1} parent=55 // pred_check
        %p843 = pneg %p194
      $region58: #{residual_block_pallas.1} parent=55 // pred_check_branch
        %845 = sbr.rel (%p843) target = $region60
      $region59: #{residual_block_pallas.1} parent=55 // pred_region
        %p846 = scmp.lt.s32.totalorder %s19, 1
        %s847 = scalar_select %p846, %s19, 1
        %s848 = smul.addr %s847, 2
        %s849 = smul.addr %s848, 8
        %s850 = scalar_lea.vmem %s7, %s849
      $region60: #{residual_block_pallas.1} parent=55 // pred_fallthru
        _
    $region56: #{residual_block_pallas.1} parent=5 // pred_fallthru
      _
  $region6: #{residual_block_pallas.1} parent=0 // loop_footer
    %s17 = sadd.s32 1, %s13
  $region7: #{residual_block_pallas.1} parent=0 // loop_footer_branch
    %12 = sbr.rel target = $region3
  $region8: #{residual_block_pallas.1} parent=0 // loop_exit
    _

</llo_original>
